<compile_context>
chip_gen: v7x
topology: tpu7x:2x2x1
jax: 0.10.0
libtpu: 0.0.40
codegen_flags: <defaults>
</compile_context>

<pallas_src>
import math
from functools import partial

import jax
import jax.numpy as jnp
from jax.experimental import pallas as pl
from jax.experimental.pallas import tpu as pltpu

LANE = 128        # f32 lane width
SUBLANE = 8       # f32 sublane count
BATCH_TILE = 256  # rows per grid step on the large-batch path


def _round_up(n, m):
    return ((n + m - 1) // m) * m


def _make_fused_mlp_kernel(num_layers):
    """Kernel refs: (x, w_stack, b_stack, out). Unrolled Linear+ReLU chain."""

    def kernel(x_ref, w_ref, b_ref, o_ref):
        h = x_ref[...]
        for l in range(num_layers):          # static unroll
            w = w_ref[l]                     # (D, D)
            b = b_ref[l]                     # (1, D)
            # MXU matmul with f32 accumulation, then bias + ReLU on the VPU.
            h = jnp.dot(h, w, preferred_element_type=jnp.float32)
            h = jnp.maximum(h + b, 0.0)
        o_ref[...] = h.astype(o_ref.dtype)

    return kernel

    # TODO(synk): once BATCH_TILE > ~256 rows, ping-pong intermediate
    # activations through two (BATCH_TILE, D) VMEM scratch buffers instead of
    # holding them in vregs across the unrolled chain (vreg-spill avoidance).
    # TODO(synk): for large hidden sizes on v6e/v7x, store weights in bf16
    # (keep f32 accumulation and f32 bias/ReLU) for ~2x MXU rate and half the
    # DMA/VMEM bytes.


def fused_mlp(x_padded, w_stacked, b_stacked, use_grid):
    """Run the whole padded MLP in one pallas_call.

    x_padded:  (Bp, D) f32, Bp % 8 == 0 (or % BATCH_TILE == 0 on grid path)
    w_stacked: (L, D, D) f32     b_stacked: (L, 1, D) f32
    """
    L, D, _ = w_stacked.shape
    Bp = x_padded.shape[0]
    kernel = _make_fused_mlp_kernel(L)
    out_shape = jax.ShapeDtypeStruct((Bp, D), jnp.float32)

    if not use_grid:
        # Tiny-batch path: gridless, everything as whole-array VMEM blocks.
        return pl.pallas_call(
            kernel,
            out_shape=out_shape,
            in_specs=[pl.BlockSpec(memory_space=pltpu.MemorySpace.VMEM)] * 3,
            out_specs=pl.BlockSpec(memory_space=pltpu.MemorySpace.VMEM),
        )(x_padded, w_stacked, b_stacked)

    # Large-batch path: parallel batch grid; weights/biases are constant
    # blocks (index_map -> (0, ...)) so they stay VMEM-resident across tiles.
    n_tiles = Bp // BATCH_TILE
    return pl.pallas_call(
        kernel,
        out_shape=out_shape,
        grid=(n_tiles,),
        in_specs=[
            pl.BlockSpec((BATCH_TILE, D), lambda i: (i, 0)),
            pl.BlockSpec((L, D, D), lambda i: (0, 0, 0)),
            pl.BlockSpec((L, 1, D), lambda i: (0, 0, 0)),
        ],
        out_specs=pl.BlockSpec((BATCH_TILE, D), lambda i: (i, 0)),
        compiler_params=pltpu.CompilerParams(
            dimension_semantics=("parallel",)),
    )(x_padded, w_stacked, b_stacked)


@partial(jax.jit, static_argnames=("output_size",))
def fc_forward(state, w_stacked, b_stacked, output_size):
    """Jitted forward: pad -> fused pallas_call -> slice."""
    B, in_dim = state.shape
    D = w_stacked.shape[1]

    use_grid = B >= 2 * BATCH_TILE
    if use_grid:
        Bp = _round_up(B, BATCH_TILE)
    else:
        Bp = _round_up(max(B, SUBLANE), SUBLANE)

    # Single pad op: batch -> sublane/tile multiple, features -> D lanes.
    x_padded = jnp.pad(state, ((0, Bp - B), (0, D - in_dim)))

    y_padded = fused_mlp(x_padded, w_stacked, b_stacked, use_grid)
    return y_padded[:B, :output_size]


class FCNetworkPallas:
    """JAX/Pallas re-implementation of FCNetwork.

    layer_sizes = [input_size, *fc_layer_sizes, output_size]
    network = Sequential(Linear(l_in, l_out), ReLU() for each consecutive
    pair) -> ReLU after every Linear, including the output layer (matches the
    PyTorch spec exactly; note this clamps the final Q/advantage outputs >= 0,
    as the reference module does).

    Kernel cost is essentially flat up to ~128 batch rows (v5e) / ~256 rows
    (v6e/v7x); batch independent states into one call rather than looping.
    """

    def __init__(self, input_size, fc_layer_sizes, output_size, key):
        layer_sizes = [input_size, *fc_layer_sizes, output_size]
        self.input_size = input_size
        self.output_size = output_size

        L = len(layer_sizes) - 1
        D = max(_round_up(s, LANE) for s in layer_sizes)

        self.params = []  # unpadded (w, b), PyTorch-equivalent (w = weight.T)
        w_stacked = jnp.zeros((L, D, D), jnp.float32)
        b_stacked = jnp.zeros((L, 1, D), jnp.float32)
        for l, (fan_in, fan_out) in enumerate(zip(layer_sizes, layer_sizes[1:])):
            key, wkey, bkey = jax.random.split(key, 3)
            # PyTorch nn.Linear default init: U(-1/sqrt(fan_in), 1/sqrt(fan_in))
            bound = 1.0 / math.sqrt(fan_in)
            w = jax.random.uniform(
                wkey, (fan_in, fan_out), jnp.float32, -bound, bound)
            b = jax.random.uniform(
                bkey, (1, fan_out), jnp.float32, -bound, bound)
            self.params.append((w, b))
            w_stacked = w_stacked.at[l, :fan_in, :fan_out].set(w)
            b_stacked = b_stacked.at[l, :, :fan_out].set(b)

        self.w_stacked = w_stacked
        self.b_stacked = b_stacked

    def __call__(self, state):
        assert state.shape[1] == self.input_size
        return fc_forward(state, self.w_stacked, self.b_stacked,
                          self.output_size)


def _reference(x, params):
    ref = x
    for w, b in params:
        ref = jnp.maximum(ref @ w + b, 0.0)
    return ref


if __name__ == "__main__":
    key = jax.random.PRNGKey(0)
    key, xkey, pkey, x2key = jax.random.split(key, 4)

    input_size = 32
    fc_layer_sizes = [64, 32]
    output_size = 16

    net = FCNetworkPallas(input_size, fc_layer_sizes, output_size, pkey)

    # Small-batch (gridless) path.
    batch = 8
    x = jax.random.normal(xkey, (batch, input_size), jnp.float32)
    y = net(x)
    jax.block_until_ready(y)
    ref = _reference(x, net.params)
    assert y.shape == (batch, output_size)
    assert jnp.allclose(y, ref, atol=1e-4, rtol=1e-4)

    # Large-batch (parallel batch-grid) path.
    big_batch = 2 * BATCH_TILE
    x2 = jax.random.normal(x2key, (big_batch, input_size), jnp.float32)
    y2 = net(x2)
    jax.block_until_ready(y2)
    ref2 = _reference(x2, net.params)
    assert y2.shape == (big_batch, output_size)
    assert jnp.allclose(y2, ref2, atol=1e-4, rtol=1e-4)

    print("KERNEL_OK")
</pallas_src>

<mosaic_0001>
module attributes {stable_mosaic.version = 11 : i64} {
  func.func @kernel(%arg0: memref<8x128xf32, #tpu.memory_space<vmem>>, %arg1: memref<3x128x128xf32, #tpu.memory_space<vmem>>, %arg2: memref<3x1x128xf32, #tpu.memory_space<vmem>>, %arg3: memref<8x128xf32, #tpu.memory_space<vmem>>) attributes {dimension_semantics = [], scalar_prefetch = 0 : i64, scratch_operands = 0 : i64, tpu.core_type = #tpu.core_type<tc>} {
    %c0 = arith.constant 0 : index
    %c0_0 = arith.constant 0 : index
    %0 = vector.load %arg0[%c0, %c0_0] : memref<8x128xf32, #tpu.memory_space<vmem>>, vector<8x128xf32>
    %c0_1 = arith.constant 0 : index
    %c0_2 = arith.constant 0 : index
    %c0_3 = arith.constant 0 : index
    %1 = vector.load %arg1[%c0_1, %c0_2, %c0_3] : memref<3x128x128xf32, #tpu.memory_space<vmem>>, vector<1x128x128xf32>
    %2 = vector.shape_cast %1 : vector<1x128x128xf32> to vector<128x128xf32>
    %c0_4 = arith.constant 0 : index
    %c0_5 = arith.constant 0 : index
    %c0_6 = arith.constant 0 : index
    %3 = vector.load %arg2[%c0_4, %c0_5, %c0_6] : memref<3x1x128xf32, #tpu.memory_space<vmem>>, vector<1x1x128xf32>
    %4 = vector.shape_cast %3 : vector<1x1x128xf32> to vector<1x128xf32>
    %cst = arith.constant dense<0.000000e+00> : vector<8x128xf32>
    %5 = tpu.matmul %0, %2, %cst {dimension_numbers = #tpu.dot_dimension_numbers<[1], [0], [0], [1], [0, 0, 1, 1], [], []>} : vector<8x128xf32>, vector<128x128xf32>, vector<8x128xf32> -> vector<8x128xf32>
    %6 = vector.broadcast %4 : vector<1x128xf32> to vector<8x128xf32>
    %7 = arith.addf %5, %6 : vector<8x128xf32>
    %cst_7 = arith.constant 0.000000e+00 : f32
    %8 = vector.broadcast %cst_7 : f32 to vector<8x128xf32>
    %9 = arith.maximumf %7, %8 : vector<8x128xf32>
    %c1 = arith.constant 1 : index
    %c0_8 = arith.constant 0 : index
    %c0_9 = arith.constant 0 : index
    %10 = vector.load %arg1[%c1, %c0_8, %c0_9] : memref<3x128x128xf32, #tpu.memory_space<vmem>>, vector<1x128x128xf32>
    %11 = vector.shape_cast %10 : vector<1x128x128xf32> to vector<128x128xf32>
    %c1_10 = arith.constant 1 : index
    %c0_11 = arith.constant 0 : index
    %c0_12 = arith.constant 0 : index
    %12 = vector.load %arg2[%c1_10, %c0_11, %c0_12] : memref<3x1x128xf32, #tpu.memory_space<vmem>>, vector<1x1x128xf32>
    %13 = vector.shape_cast %12 : vector<1x1x128xf32> to vector<1x128xf32>
    %cst_13 = arith.constant dense<0.000000e+00> : vector<8x128xf32>
    %14 = tpu.matmul %9, %11, %cst_13 {dimension_numbers = #tpu.dot_dimension_numbers<[1], [0], [0], [1], [0, 0, 1, 1], [], []>} : vector<8x128xf32>, vector<128x128xf32>, vector<8x128xf32> -> vector<8x128xf32>
    %15 = vector.broadcast %13 : vector<1x128xf32> to vector<8x128xf32>
    %16 = arith.addf %14, %15 : vector<8x128xf32>
    %cst_14 = arith.constant 0.000000e+00 : f32
    %17 = vector.broadcast %cst_14 : f32 to vector<8x128xf32>
    %18 = arith.maximumf %16, %17 : vector<8x128xf32>
    %c2 = arith.constant 2 : index
    %c0_15 = arith.constant 0 : index
    %c0_16 = arith.constant 0 : index
    %19 = vector.load %arg1[%c2, %c0_15, %c0_16] : memref<3x128x128xf32, #tpu.memory_space<vmem>>, vector<1x128x128xf32>
    %20 = vector.shape_cast %19 : vector<1x128x128xf32> to vector<128x128xf32>
    %c2_17 = arith.constant 2 : index
    %c0_18 = arith.constant 0 : index
    %c0_19 = arith.constant 0 : index
    %21 = vector.load %arg2[%c2_17, %c0_18, %c0_19] : memref<3x1x128xf32, #tpu.memory_space<vmem>>, vector<1x1x128xf32>
    %22 = vector.shape_cast %21 : vector<1x1x128xf32> to vector<1x128xf32>
    %cst_20 = arith.constant dense<0.000000e+00> : vector<8x128xf32>
    %23 = tpu.matmul %18, %20, %cst_20 {dimension_numbers = #tpu.dot_dimension_numbers<[1], [0], [0], [1], [0, 0, 1, 1], [], []>} : vector<8x128xf32>, vector<128x128xf32>, vector<8x128xf32> -> vector<8x128xf32>
    %24 = vector.broadcast %22 : vector<1x128xf32> to vector<8x128xf32>
    %25 = arith.addf %23, %24 : vector<8x128xf32>
    %cst_21 = arith.constant 0.000000e+00 : f32
    %26 = vector.broadcast %cst_21 : f32 to vector<8x128xf32>
    %27 = arith.maximumf %25, %26 : vector<8x128xf32>
    %c0_22 = arith.constant 0 : index
    %c0_23 = arith.constant 0 : index
    %28 = vector.load %arg3[%c0_22, %c0_23] : memref<8x128xf32, #tpu.memory_space<vmem>>, vector<8x128xf32>
    tpu.vector_store %arg3[%c0_22, %c0_23], %27 {strides = array<i32>} : memref<8x128xf32, #tpu.memory_space<vmem>>, vector<8x128xf32>,
    return
  }
}

</mosaic_0001>

<llo_original>
// kernel: fc_forward.1
$region0: #{fc_forward.1}
  #allocation0 [shape = 'u32[]', space=smem, size = 0x4, offset = 0x4, fixed_abs, tag = 'smem constant byte address 0x4 - core index']
  #allocation1 [shape = 'u32[144,128]{1,0:T(1,128)}', space=vmem, size = 0x12000, scoped, tag = 'internal scratch']
  %s0 = inlined_call_operand.vmem [shape: f32[8,128], index: 0, kind: input, shape index: {}]
  %s1 = inlined_call_operand.hbm [shape: f32[3,128,128], index: 1, kind: input, shape index: {}]
  %s2 = inlined_call_operand.vmem [shape: f32[3,1,128], index: 2, kind: input, shape index: {}]
  %s3 = inlined_call_operand.hbm [shape: f32[8,128], index: 3, kind: output, shape index: {}]
  %s4 = sld [smem:[#allocation0]]
  $region26: #{fc_forward.1} parent=0
    _
  %s6 = ssub.s32 1, %s4
  %s7 = scalar_select 0, %s6, %s4
  $region1: #{fc_forward.1} parent=0
    #allocation2 [shape = 'u8[196608]{0}', space=vmem, size = 0x30000, scoped, tag = 'input window, operand 1, single buffered']
    #allocation3 [shape = 's32[1]{0}', space=sflag, size = 0x4, scoped, tag = 'scoped memory for fc_forward.1']
    #allocation4 [shape = 's32[1]{0}', space=sflag, size = 0x4, scoped, tag = 'scoped memory for fc_forward.1']
    #allocation5 [shape = 'u8[4096]{0}', space=vmem, size = 0x1000, scoped, tag = 'output window, operand 0, single buffered']
    %8 = vsyncpa [#allocation3], 0
    %9 = vsyncpa [#allocation4], 0
    // Predicated region
    $region2: #{fc_forward.1} parent=1 // pred_check
      _
    $region3: #{fc_forward.1} parent=1 // pred_check_branch
      %11 = sbr.rel (0) target = $region5
    $region4: #{fc_forward.1} parent=1 // pred_region
      _
    $region5: #{fc_forward.1} parent=1 // pred_fallthru
      _
    // Predicated region
    $region6: #{fc_forward.1} parent=1 // pred_check
      _
    $region7: #{fc_forward.1} parent=1 // pred_check_branch
      %13 = sbr.rel (0) target = $region9
    $region8: #{fc_forward.1} parent=1 // pred_region
      %s15 = ssub.s32 6144, 6144
      %16 = vsyncadd [#allocation3], %s15
      %s17 = sshll.u32 [#allocation2], 4
      %s18 = int_to_ptr.vmem [resolvable:$true] %s17
      %23 = dma.hbm_to_vmem [thread:$0]  %s1, 6144, %s18, [#allocation3], 128, 128, 8
    $region9: #{fc_forward.1} parent=1 // pred_fallthru
      _
    // Predicated region
    $region10: #{fc_forward.1} parent=1 // pred_check
      _
    $region11: #{fc_forward.1} parent=1 // pred_check_branch
      %25 = sbr.rel (0) target = $region13
    $region12: #{fc_forward.1} parent=1 // pred_region
      _
    $region13: #{fc_forward.1} parent=1 // pred_fallthru
      _
    // Predicated region
    $region14: #{fc_forward.1} parent=1 // pred_check
      _
    $region15: #{fc_forward.1} parent=1 // pred_check_branch
      %27 = sbr.rel (0) target = $region17
    $region16: #{fc_forward.1} parent=1 // pred_region
      %28 = dma.done [#allocation3], 6144
    $region17: #{fc_forward.1} parent=1 // pred_fallthru
      _
    %v29 = vld [vmem:[%s0] sm:$0xff]
    %v30 = vld [vmem:[#allocation2] sm:$0xff]
    %v31 = vld [vmem:[#allocation2 + $0x8] sm:$0xff]
    %v32 = vld [vmem:[#allocation2 + $0x10] sm:$0xff]
    %v33 = vld [vmem:[#allocation2 + $0x18] sm:$0xff]
    %v34 = vld [vmem:[#allocation2 + $0x20] sm:$0xff]
    %v35 = vld [vmem:[#allocation2 + $0x28] sm:$0xff]
    %v36 = vld [vmem:[#allocation2 + $0x30] sm:$0xff]
    %v37 = vld [vmem:[#allocation2 + $0x38] sm:$0xff]
    %v38 = vld [vmem:[#allocation2 + $0x40] sm:$0xff]
    %v39 = vld [vmem:[#allocation2 + $0x48] sm:$0xff]
    %v40 = vld [vmem:[#allocation2 + $0x50] sm:$0xff]
    %v41 = vld [vmem:[#allocation2 + $0x58] sm:$0xff]
    %v42 = vld [vmem:[#allocation2 + $0x60] sm:$0xff]
    %v43 = vld [vmem:[#allocation2 + $0x68] sm:$0xff]
    %v44 = vld [vmem:[#allocation2 + $0x70] sm:$0xff]
    %v45 = vld [vmem:[#allocation2 + $0x78] sm:$0xff]
    %v46 = vld [vmem:[%s2] sm:$0x1]
    %v48 = vlaneseq
    %v49 = vshrl.u32 %v48, 7
    %v50 = vsub.s32 0, %v49
    %v51 = vrot.slane %v46, %v50
    %53 = vmatprep.subr.mxu0 0.0
    %54 = vmatpush1.msra.mxu0 %v30
    %55 = vmatprep.subr.mxu0 0.0
    %56 = vmatpush1.msra.mxu0 %v31
    %57 = vmatprep.subr.mxu0 0.0
    %58 = vmatpush1.msra.mxu0 %v32
    %59 = vmatprep.subr.mxu0 0.0
    %60 = vmatpush1.msra.mxu0 %v33
    %61 = vmatprep.subr.mxu0 0.0
    %62 = vmatpush1.msra.mxu0 %v34
    %63 = vmatprep.subr.mxu0 0.0
    %64 = vmatpush1.msra.mxu0 %v35
    %65 = vmatprep.subr.mxu0 0.0
    %66 = vmatpush1.msra.mxu0 %v36
    %67 = vmatprep.subr.mxu0 0.0
    %68 = vmatpush1.msra.mxu0 %v37
    %69 = vmatprep.subr.mxu0 0.0
    %70 = vmatpush1.msra.mxu0 %v38
    %71 = vmatprep.subr.mxu0 0.0
    %72 = vmatpush1.msra.mxu0 %v39
    %73 = vmatprep.subr.mxu0 0.0
    %74 = vmatpush1.msra.mxu0 %v40
    %75 = vmatprep.subr.mxu0 0.0
    %76 = vmatpush1.msra.mxu0 %v41
    %77 = vmatprep.subr.mxu0 0.0
    %78 = vmatpush1.msra.mxu0 %v42
    %79 = vmatprep.subr.mxu0 0.0
    %80 = vmatpush1.msra.mxu0 %v43
    %81 = vmatprep.subr.mxu0 0.0
    %82 = vmatpush1.msra.mxu0 %v44
    %83 = vmatprep.subr.mxu0 0.0
    %84 = vmatpush1.msra.mxu0 %v45
    %85 = vmatprep.subr.mxu0 0.0
    %86 = vmatpush1.msra.mxu0 0.0
    %87 = vmatprep.subr.mxu0 0.0
    %88 = vmatpush1.msra.mxu0 0.0
    %89 = vmatprep.subr.mxu0 0.0
    %90 = vmatpush1.msra.mxu0 0.0
    %91 = vmatprep.subr.mxu0 0.0
    %92 = vmatpush1.msra.mxu0 0.0
    %93 = vmatprep.subr.mxu0 0.0
    %94 = vmatpush1.msra.mxu0 0.0
    %95 = vmatprep.subr.mxu0 0.0
    %96 = vmatpush1.msra.mxu0 0.0
    %97 = vmatprep.subr.mxu0 0.0
    %98 = vmatpush1.msra.mxu0 0.0
    %99 = vmatprep.subr.mxu0 0.0
    %100 = vmatpush1.msra.mxu0 0.0
    %101 = vmatprep.subr.mxu0 0.0
    %102 = vmatpush1.msra.mxu0 0.0
    %103 = vmatprep.subr.mxu0 0.0
    %104 = vmatpush1.msra.mxu0 0.0
    %105 = vmatprep.subr.mxu0 0.0
    %106 = vmatpush1.msra.mxu0 0.0
    %107 = vmatprep.subr.mxu0 0.0
    %108 = vmatpush1.msra.mxu0 0.0
    %109 = vmatprep.subr.mxu0 0.0
    %110 = vmatpush1.msra.mxu0 0.0
    %111 = vmatprep.subr.mxu0 0.0
    %112 = vmatpush1.msra.mxu0 0.0
    %113 = vmatprep.subr.mxu0 0.0
    %114 = vmatpush1.msra.mxu0 0.0
    %115 = vmatprep.subr.mxu0 0.0
    %116 = vmatpush1.msra.mxu0 0.0
    %117 = vmatprep.mubr.f32.mxu0 0.0
    %118 = vmatmul.mubr.f32.gmra.mrb[0].mxu0 %v29
    %v119 = vpop.f32.mrb[0].mxu0
    %v120 = vadd.f32 %v51, %v119
    %v121 = vpop.f32.mrb[0].mxu0
    %122 = vdwg.mxu0
    %v123 = vmax.f32 %v120, 0.0
    %s124 = scalar_lea.vmem [#allocation2], 128
    %v125 = vld [vmem:[%s124] sm:$0xff]
    %v126 = vld [vmem:[%s124 + $0x8] sm:$0xff]
    %v127 = vld [vmem:[%s124 + $0x10] sm:$0xff]
    %v128 = vld [vmem:[%s124 + $0x18] sm:$0xff]
    %v129 = vld [vmem:[%s124 + $0x20] sm:$0xff]
    %v130 = vld [vmem:[%s124 + $0x28] sm:$0xff]
    %v131 = vld [vmem:[%s124 + $0x30] sm:$0xff]
    %v132 = vld [vmem:[%s124 + $0x38] sm:$0xff]
    %v133 = vld [vmem:[%s124 + $0x40] sm:$0xff]
    %v134 = vld [vmem:[%s124 + $0x48] sm:$0xff]
    %v135 = vld [vmem:[%s124 + $0x50] sm:$0xff]
    %v136 = vld [vmem:[%s124 + $0x58] sm:$0xff]
    %v137 = vld [vmem:[%s124 + $0x60] sm:$0xff]
    %v138 = vld [vmem:[%s124 + $0x68] sm:$0xff]
    %v139 = vld [vmem:[%s124 + $0x70] sm:$0xff]
    %v140 = vld [vmem:[%s124 + $0x78] sm:$0xff]
    %s141 = scalar_lea.vmem %s2, 1
    %v142 = vld [vmem:[%s141] sm:$0x1]
    %v144 = vlaneseq
    %v145 = vshrl.u32 %v144, 7
    %v146 = vsub.s32 0, %v145
    %v147 = vrot.slane %v142, %v146
    %149 = vmatprep.subr.mxu0 0.0
    %150 = vmatpush1.msra.mxu0 %v125
    %151 = vmatprep.subr.mxu0 0.0
    %152 = vmatpush1.msra.mxu0 %v126
    %153 = vmatprep.subr.mxu0 0.0
    %154 = vmatpush1.msra.mxu0 %v127
    %155 = vmatprep.subr.mxu0 0.0
    %156 = vmatpush1.msra.mxu0 %v128
    %157 = vmatprep.subr.mxu0 0.0
    %158 = vmatpush1.msra.mxu0 %v129
    %159 = vmatprep.subr.mxu0 0.0
    %160 = vmatpush1.msra.mxu0 %v130
    %161 = vmatprep.subr.mxu0 0.0
    %162 = vmatpush1.msra.mxu0 %v131
    %163 = vmatprep.subr.mxu0 0.0
    %164 = vmatpush1.msra.mxu0 %v132
    %165 = vmatprep.subr.mxu0 0.0
    %166 = vmatpush1.msra.mxu0 %v133
    %167 = vmatprep.subr.mxu0 0.0
    %168 = vmatpush1.msra.mxu0 %v134
    %169 = vmatprep.subr.mxu0 0.0
    %170 = vmatpush1.msra.mxu0 %v135
    %171 = vmatprep.subr.mxu0 0.0
    %172 = vmatpush1.msra.mxu0 %v136
    %173 = vmatprep.subr.mxu0 0.0
    %174 = vmatpush1.msra.mxu0 %v137
    %175 = vmatprep.subr.mxu0 0.0
    %176 = vmatpush1.msra.mxu0 %v138
    %177 = vmatprep.subr.mxu0 0.0
    %178 = vmatpush1.msra.mxu0 %v139
    %179 = vmatprep.subr.mxu0 0.0
    %180 = vmatpush1.msra.mxu0 %v140
    %181 = vmatprep.subr.mxu0 0.0
    %182 = vmatpush1.msra.mxu0 0.0
    %183 = vmatprep.subr.mxu0 0.0
    %184 = vmatpush1.msra.mxu0 0.0
    %185 = vmatprep.subr.mxu0 0.0
    %186 = vmatpush1.msra.mxu0 0.0
    %187 = vmatprep.subr.mxu0 0.0
    %188 = vmatpush1.msra.mxu0 0.0
    %189 = vmatprep.subr.mxu0 0.0
    %190 = vmatpush1.msra.mxu0 0.0
    %191 = vmatprep.subr.mxu0 0.0
    %192 = vmatpush1.msra.mxu0 0.0
    %193 = vmatprep.subr.mxu0 0.0
    %194 = vmatpush1.msra.mxu0 0.0
    %195 = vmatprep.subr.mxu0 0.0
    %196 = vmatpush1.msra.mxu0 0.0
    %197 = vmatprep.subr.mxu0 0.0
    %198 = vmatpush1.msra.mxu0 0.0
    %199 = vmatprep.subr.mxu0 0.0
    %200 = vmatpush1.msra.mxu0 0.0
    %201 = vmatprep.subr.mxu0 0.0
    %202 = vmatpush1.msra.mxu0 0.0
    %203 = vmatprep.subr.mxu0 0.0
    %204 = vmatpush1.msra.mxu0 0.0
    %205 = vmatprep.subr.mxu0 0.0
    %206 = vmatpush1.msra.mxu0 0.0
    %207 = vmatprep.subr.mxu0 0.0
    %208 = vmatpush1.msra.mxu0 0.0
    %209 = vmatprep.subr.mxu0 0.0
    %210 = vmatpush1.msra.mxu0 0.0
    %211 = vmatprep.subr.mxu0 0.0
    %212 = vmatpush1.msra.mxu0 0.0
    %213 = vmatprep.mubr.f32.mxu0 0.0
    %214 = vmatmul.mubr.f32.gmra.mrb[0].mxu0 %v123
    %v215 = vpop.f32.mrb[0].mxu0
    %v216 = vadd.f32 %v147, %v215
    %v217 = vpop.f32.mrb[0].mxu0
    %218 = vdwg.mxu0
    %v219 = vmax.f32 %v216, 0.0
    %s220 = scalar_lea.vmem [#allocation2], 256
    %v221 = vld [vmem:[%s220] sm:$0xff]
    %v222 = vld [vmem:[%s220 + $0x8] sm:$0xff]
    %v223 = vld [vmem:[%s220 + $0x10] sm:$0xff]
    %v224 = vld [vmem:[%s220 + $0x18] sm:$0xff]
    %v225 = vld [vmem:[%s220 + $0x20] sm:$0xff]
    %v226 = vld [vmem:[%s220 + $0x28] sm:$0xff]
    %v227 = vld [vmem:[%s220 + $0x30] sm:$0xff]
    %v228 = vld [vmem:[%s220 + $0x38] sm:$0xff]
    %v229 = vld [vmem:[%s220 + $0x40] sm:$0xff]
    %v230 = vld [vmem:[%s220 + $0x48] sm:$0xff]
    %v231 = vld [vmem:[%s220 + $0x50] sm:$0xff]
    %v232 = vld [vmem:[%s220 + $0x58] sm:$0xff]
    %v233 = vld [vmem:[%s220 + $0x60] sm:$0xff]
    %v234 = vld [vmem:[%s220 + $0x68] sm:$0xff]
    %v235 = vld [vmem:[%s220 + $0x70] sm:$0xff]
    %v236 = vld [vmem:[%s220 + $0x78] sm:$0xff]
    %s237 = scalar_lea.vmem %s2, 2
    %v238 = vld [vmem:[%s237] sm:$0x1]
    %v240 = vlaneseq
    %v241 = vshrl.u32 %v240, 7
    %v242 = vsub.s32 0, %v241
    %v243 = vrot.slane %v238, %v242
    %245 = vmatprep.subr.mxu0 0.0
    %246 = vmatpush1.msra.mxu0 %v221
    %247 = vmatprep.subr.mxu0 0.0
    %248 = vmatpush1.msra.mxu0 %v222
    %249 = vmatprep.subr.mxu0 0.0
    %250 = vmatpush1.msra.mxu0 %v223
    %251 = vmatprep.subr.mxu0 0.0
    %252 = vmatpush1.msra.mxu0 %v224
    %253 = vmatprep.subr.mxu0 0.0
    %254 = vmatpush1.msra.mxu0 %v225
    %255 = vmatprep.subr.mxu0 0.0
    %256 = vmatpush1.msra.mxu0 %v226
    %257 = vmatprep.subr.mxu0 0.0
    %258 = vmatpush1.msra.mxu0 %v227
    %259 = vmatprep.subr.mxu0 0.0
    %260 = vmatpush1.msra.mxu0 %v228
    %261 = vmatprep.subr.mxu0 0.0
    %262 = vmatpush1.msra.mxu0 %v229
    %263 = vmatprep.subr.mxu0 0.0
    %264 = vmatpush1.msra.mxu0 %v230
    %265 = vmatprep.subr.mxu0 0.0
    %266 = vmatpush1.msra.mxu0 %v231
    %267 = vmatprep.subr.mxu0 0.0
    %268 = vmatpush1.msra.mxu0 %v232
    %269 = vmatprep.subr.mxu0 0.0
    %270 = vmatpush1.msra.mxu0 %v233
    %271 = vmatprep.subr.mxu0 0.0
    %272 = vmatpush1.msra.mxu0 %v234
    %273 = vmatprep.subr.mxu0 0.0
    %274 = vmatpush1.msra.mxu0 %v235
    %275 = vmatprep.subr.mxu0 0.0
    %276 = vmatpush1.msra.mxu0 %v236
    %277 = vmatprep.subr.mxu0 0.0
    %278 = vmatpush1.msra.mxu0 0.0
    %279 = vmatprep.subr.mxu0 0.0
    %280 = vmatpush1.msra.mxu0 0.0
    %281 = vmatprep.subr.mxu0 0.0
    %282 = vmatpush1.msra.mxu0 0.0
    %283 = vmatprep.subr.mxu0 0.0
    %284 = vmatpush1.msra.mxu0 0.0
    %285 = vmatprep.subr.mxu0 0.0
    %286 = vmatpush1.msra.mxu0 0.0
    %287 = vmatprep.subr.mxu0 0.0
    %288 = vmatpush1.msra.mxu0 0.0
    %289 = vmatprep.subr.mxu0 0.0
    %290 = vmatpush1.msra.mxu0 0.0
    %291 = vmatprep.subr.mxu0 0.0
    %292 = vmatpush1.msra.mxu0 0.0
    %293 = vmatprep.subr.mxu0 0.0
    %294 = vmatpush1.msra.mxu0 0.0
    %295 = vmatprep.subr.mxu0 0.0
    %296 = vmatpush1.msra.mxu0 0.0
    %297 = vmatprep.subr.mxu0 0.0
    %298 = vmatpush1.msra.mxu0 0.0
    %299 = vmatprep.subr.mxu0 0.0
    %300 = vmatpush1.msra.mxu0 0.0
    %301 = vmatprep.subr.mxu0 0.0
    %302 = vmatpush1.msra.mxu0 0.0
    %303 = vmatprep.subr.mxu0 0.0
    %304 = vmatpush1.msra.mxu0 0.0
    %305 = vmatprep.subr.mxu0 0.0
    %306 = vmatpush1.msra.mxu0 0.0
    %307 = vmatprep.subr.mxu0 0.0
    %308 = vmatpush1.msra.mxu0 0.0
    %309 = vmatprep.mubr.f32.mxu0 0.0
    %310 = vmatmul.mubr.f32.gmra.mrb[0].mxu0 %v219
    %v311 = vpop.f32.mrb[0].mxu0
    %v312 = vadd.f32 %v243, %v311
    %v313 = vpop.f32.mrb[0].mxu0
    %314 = vdwg.mxu0
    %v315 = vmax.f32 %v312, 0.0
    %316 = vst [vmem:[#allocation5] sm:$0xff] %v315
    // Predicated region
    $region18: #{fc_forward.1} parent=1 // pred_check
      _
    $region19: #{fc_forward.1} parent=1 // pred_check_branch
      %318 = sbr.rel (0) target = $region21
    $region20: #{fc_forward.1} parent=1 // pred_region
      %s320 = ssub.s32 128, 128
      %321 = vsyncadd [#allocation4], %s320
      %s323 = sshll.u32 [#allocation5], 4
      %s324 = int_to_ptr.vmem [resolvable:$true] %s323
      %326 = dma.vmem_to_hbm [thread:$0]  %s324, 128, %s3, [#allocation4]
    $region21: #{fc_forward.1} parent=1 // pred_fallthru
      _
    // Predicated region
    $region22: #{fc_forward.1} parent=1 // pred_check
      _
    $region23: #{fc_forward.1} parent=1 // pred_check_branch
      %328 = sbr.rel (0) target = $region25
    $region24: #{fc_forward.1} parent=1 // pred_region
      %329 = dma.done [#allocation4], 128
    $region25: #{fc_forward.1} parent=1 // pred_fallthru
      _
    %330 = vsyncpa [#allocation3], 1
    %331 = vsyncpa [#allocation4], 1

</llo_original>
